<compile_context>
chip_gen: v6e
topology: v6e:2x2x1
jax: 0.10.0
libtpu: 0.0.40
codegen_flags: <defaults>
</compile_context>

<pallas_src>
import jax
import jax.numpy as jnp
from jax.experimental import pallas as pl
from jax.experimental.pallas import tpu as pltpu

_LANE = 128
_MAX_LANES = 1024                          # 8 vregs wide: long contiguous DMA rows
_PER_BATCH_BLOCK_MIN_BYTES = 512 * 1024    # ~85% of HBM roofline at >=512 KiB blocks
# Minimum sublane tile per element size: sub-32-bit dtypes pack along sublanes.
_MIN_SUBLANES = {8: 8, 4: 8, 2: 16, 1: 32}


def _round_up(x, m):
    return (x + m - 1) // m * m


def _vmem_limit_bytes():
    """Generation-aware scoped VMEM limit: ~96 MiB on v5e/v6e (128 MiB physical),
    ~48 MiB on v7x (64 MiB physical)."""
    cap = 64 * 1024 * 1024
    try:
        info = pltpu.get_tpu_info()
        c = int(getattr(info, "vmem_capacity_bytes", 0) or 0)
        if c > 0:
            cap = c
    except Exception:
        pass
    return min((cap * 3) // 4, 96 * 1024 * 1024)


def _pick_tile(n, min_sub, max_tile):
    """Largest multiple of `min_sub` that divides n and is <= max_tile.
    Falls back to n itself (full-extent block dims are always legal) or, as a
    last resort, to some divisor of n <= max_tile."""
    best = 0
    t = min_sub
    lim = min(n, max_tile)
    while t <= lim:
        if n % t == 0:
            best = t
        t += min_sub
    if best:
        return best
    if n <= max_tile:
        return n
    for d in range(min(max_tile, 1024), 0, -1):
        if n % d == 0:
            return d
    return 1


# ---------------------------------------------------------------------------
# Pallas kernels: apply_func — per-batch-element gated apply_transform
# ---------------------------------------------------------------------------
def _gated_kernel_smem(gate_ref, x_ref, o_ref):
    """Per-batch blocks: gate is a scalar-prefetched SMEM (B,) int32 vector and is
    uniform per block, so gated-off blocks skip the transform via pl.when."""
    b = pl.program_id(0)
    gate_on = gate_ref[b] != 0

    @pl.when(gate_on)
    def _():
        # TODO(synk): apply_transform is abstract in _BasicAugmentationBase (raises
        # NotImplementedError); identity is the placeholder.  A real augmentation's
        # element-wise compute slots in here and is skipped at zero cost for
        # gated-off batch elements.
        o_ref[...] = x_ref[...].astype(o_ref.dtype)

    @pl.when(gate_ref[b] == 0)
    def _():
        o_ref[...] = x_ref[...].astype(o_ref.dtype)   # pass-through (+ fused upcast)


def _gated_kernel_vmem(gate_ref, x_ref, o_ref):
    """Batch-spanning blocks: gate is a (tb, 1) int32 VMEM column, selected per
    sublane (batch row) with a broadcast where."""
    x = x_ref[...].astype(o_ref.dtype)
    applied = x   # TODO(synk): apply_transform placeholder (identity).
    o_ref[...] = jnp.where(gate_ref[...] != 0, applied, x)


# ---------------------------------------------------------------------------
# apply_func dispatch: layout + tiling selection
# ---------------------------------------------------------------------------
def _apply_per_batch(x_flat, gate_i32, out_dtype, F, min_sub, budget_elems, vmem_limit):
    """One batch element per block: (1, tr, tf) tiles of the (B, R, tf) view,
    SMEM-prefetched gate, pl.when transform skip."""
    B = x_flat.shape[0]
    in_sz = x_flat.dtype.itemsize
    out_sz = jnp.dtype(out_dtype).itemsize

    tf = min(_round_up(F, _LANE), _MAX_LANES)
    Fp = _round_up(F, tf)
    R = Fp // tf

    max_tr = max(min_sub, budget_elems // tf)
    if B == 1:                       # keep >=2 blocks so both v7x cores get work
        max_tr = min(max_tr, max(min_sub, _round_up(max(1, R // 2), min_sub)))
    tr = _pick_tile(R, min_sub, max_tr)
    if tr != R and tr % min_sub != 0:   # no sublane-aligned divisor: pad row count
        R = _round_up(R, min_sub)
        Fp = R * tf
        tr = _pick_tile(R, min_sub, max_tr)

    if Fp != F:
        x_flat = jnp.pad(x_flat, ((0, 0), (0, Fp - F)))
    x3 = x_flat.reshape(B, R, tf)

    grid = (B, R // tr)
    out3 = pl.pallas_call(
        _gated_kernel_smem,
        out_shape=jax.ShapeDtypeStruct((B, R, tf), out_dtype),
        grid_spec=pltpu.PrefetchScalarGridSpec(
            num_scalar_prefetch=1,
            grid=grid,
            in_specs=[pl.BlockSpec((1, tr, tf), lambda b, r, gate: (b, r, 0))],
            out_specs=pl.BlockSpec((1, tr, tf), lambda b, r, gate: (b, r, 0)),
        ),
        compiler_params=pltpu.CompilerParams(
            dimension_semantics=("parallel", "parallel"),
            vmem_limit_bytes=vmem_limit,
        ),
        cost_estimate=pl.CostEstimate(
            flops=0, transcendentals=0,
            bytes_accessed=int(B * Fp * (in_sz + out_sz) + B * 4)),
    )(gate_i32, x3)

    out_flat = out3.reshape(B, Fp)
    if Fp != F:
        out_flat = out_flat[:, :F]
    return out_flat


def _apply_batch_spanning(x_flat, gate_i32, out_dtype, F, min_sub, budget_elems, vmem_limit):
    """Small rows: fold batch rows into the sublane dim with (tb, Fp) blocks and a
    (tb, 1) VMEM gate column; tb grows toward the VMEM budget (no 64-row cap)."""
    B = x_flat.shape[0]
    in_sz = x_flat.dtype.itemsize
    out_sz = jnp.dtype(out_dtype).itemsize

    Fp = _round_up(F, _LANE)
    budget_rows = max(1, budget_elems // Fp)
    split_cap = _round_up(max(1, B // 2), min_sub)   # keep >=2 blocks when possible
    max_tb = max(min_sub, min(budget_rows, split_cap))
    tb = _pick_tile(B, min_sub, max_tb)
    Bp = B
    if tb != B and tb % min_sub != 0:                # no aligned divisor: pad the batch
        Bp = _round_up(B, min_sub)
        tb = _pick_tile(Bp, min_sub, max_tb)

    if Bp != B or Fp != F:
        x_flat = jnp.pad(x_flat, ((0, Bp - B), (0, Fp - F)))
        gate_col = jnp.pad(gate_i32, (0, Bp - B)).reshape(Bp, 1)
    else:
        gate_col = gate_i32.reshape(B, 1)

    grid = (Bp // tb,)
    out = pl.pallas_call(
        _gated_kernel_vmem,
        out_shape=jax.ShapeDtypeStruct((Bp, Fp), out_dtype),
        grid=grid,
        in_specs=[
            pl.BlockSpec((tb, 1), lambda i: (i, 0)),
            pl.BlockSpec((tb, Fp), lambda i: (i, 0)),
        ],
        out_specs=pl.BlockSpec((tb, Fp), lambda i: (i, 0)),
        compiler_params=pltpu.CompilerParams(
            dimension_semantics=("parallel",),
            vmem_limit_bytes=vmem_limit,
        ),
        cost_estimate=pl.CostEstimate(
            flops=0, transcendentals=0,
            bytes_accessed=int(Bp * Fp * (in_sz + out_sz) + Bp * 4)),
    )(gate_col, x_flat)

    if Bp != B or Fp != F:
        out = out[:B, :F]
    return out


def apply_func_pallas(in_tensor, gate_bool, out_dtype):
    """kornia apply_func: gated apply_transform over the batch, fused with the
    transform_tensor dtype standardization, in a single Pallas launch."""
    # TODO(synk): data-dependent row compaction (visit only gate==1 rows) plus
    # input_output_aliases would cut HBM traffic by ~p; left out because safe
    # buffer donation is not guaranteed in eager mode.
    batch_shape = in_tensor.shape
    B = batch_shape[0]
    F = 1
    for d in batch_shape[1:]:
        F *= int(d)

    in_sz = jnp.dtype(in_tensor.dtype).itemsize
    out_sz = jnp.dtype(out_dtype).itemsize
    min_sub = max(_MIN_SUBLANES.get(in_sz, 8), _MIN_SUBLANES.get(out_sz, 8))
    per_elem = in_sz + out_sz

    vmem_limit = _vmem_limit_bytes()
    # Per-block element budget: double-buffered input + output blocks must stay
    # within the scoped limit with ~2x headroom for compiler scratch.
    budget_elems = max(min_sub * _LANE, vmem_limit // (4 * per_elem))

    gate_i32 = jnp.broadcast_to(gate_bool.astype(jnp.int32).reshape(-1), (B,))
    x_flat = in_tensor.reshape(B, F)

    if B == 1 or _round_up(F, _LANE) * per_elem >= _PER_BATCH_BLOCK_MIN_BYTES:
        out_flat = _apply_per_batch(x_flat, gate_i32, out_dtype, F, min_sub,
                                    budget_elems, vmem_limit)
    else:
        out_flat = _apply_batch_spanning(x_flat, gate_i32, out_dtype, F, min_sub,
                                         budget_elems, vmem_limit)
    return out_flat.reshape(batch_shape)


# ---------------------------------------------------------------------------
# __batch_prob_generator__ — Bernoulli gating (host/XLA side, like kornia's CPU RNG)
# ---------------------------------------------------------------------------
def batch_prob_generator(key, batch_size, p, p_batch, same_on_batch):
    kb, ke = jax.random.split(key)

    # single Bernoulli(p_batch) batch gate
    if p_batch == 1.0:
        gate = jnp.ones((1,), jnp.float32)
    elif p_batch == 0.0:
        gate = jnp.zeros((1,), jnp.float32)
    else:
        gate = jax.random.bernoulli(kb, p_batch, (1,)).astype(jnp.float32)

    # per-element Bernoulli(p) samples
    if p == 1.0:
        elem = jnp.ones((batch_size,), jnp.float32)
    elif p == 0.0:
        elem = jnp.zeros((batch_size,), jnp.float32)
    elif same_on_batch:
        draw = jax.random.bernoulli(ke, p, (1,)).astype(jnp.float32)
        elem = jnp.broadcast_to(draw, (batch_size,))
    else:
        elem = jax.random.bernoulli(ke, p, (batch_size,)).astype(jnp.float32)

    # kornia: if gate.sum()==1 -> gate * elem ; else repeat gate (zeros).
    # For a plain {0,1} Bernoulli gate both branches coincide with gate * elem.
    return gate * elem


# ---------------------------------------------------------------------------
# Module wrapper mirroring _BasicAugmentationBase.forward
# ---------------------------------------------------------------------------
class BasicAugmentationBasePallas:
    def __init__(self, p=0.5, p_batch=1.0, same_on_batch=False, keepdim=False, seed=0):
        self.p = float(p)
        self.p_batch = float(p_batch)
        self.same_on_batch = bool(same_on_batch)
        self.keepdim = bool(keepdim)
        self._params = {}
        self.flags = {}
        self._rng_key = jax.random.PRNGKey(seed)   # stateful default RNG (split per call)

    def _next_key(self):
        self._rng_key, k = jax.random.split(self._rng_key)
        return k

    @staticmethod
    def _output_dtype(x):
        return x.dtype if jnp.issubdtype(x.dtype, jnp.floating) else jnp.float32

    def transform_tensor(self, x):
        # Standardize dtype (integer images -> f32).  In the Pallas path this cast
        # is fused into the kernel; this method is only used on short-circuit paths.
        return x if jnp.issubdtype(x.dtype, jnp.floating) else x.astype(jnp.float32)

    def forward_parameters(self, batch_shape, key=None):
        if key is None:
            key = self._next_key()
        batch_prob = batch_prob_generator(
            key, batch_shape[0], self.p, self.p_batch, self.same_on_batch)
        return {
            "batch_prob": batch_prob,
            "forward_input_shape": jnp.asarray(batch_shape, dtype=jnp.int32),
        }

    def forward(self, x, params=None, seed=None):
        input_shape = x.shape
        in_tensor = x if x.ndim >= 4 else x[None]      # ensure batched NCHW
        batch_shape = in_tensor.shape
        B = batch_shape[0]
        out_dtype = self._output_dtype(in_tensor)

        # Static short-circuit: the augmentation can never apply.
        if params is None and (self.p == 0.0 or self.p_batch == 0.0):
            self._params = {
                "batch_prob": jnp.zeros((B,), jnp.float32),
                "forward_input_shape": jnp.asarray(batch_shape, dtype=jnp.int32),
            }
            output = self.transform_tensor(in_tensor)
            if self.keepdim and output.shape != input_shape:
                output = output.reshape(input_shape)
            return output

        if params is None:
            key = jax.random.PRNGKey(seed) if seed is not None else None
            params = self.forward_parameters(batch_shape, key=key)
        if "batch_prob" not in params:
            params["batch_prob"] = jnp.ones((B,), jnp.float32)
        self._params = params

        gate = params["batch_prob"] > 0.5
        output = apply_func_pallas(in_tensor, gate, out_dtype)

        # transform_output_tensor: restore original (possibly un-batched) shape
        if self.keepdim and output.shape != input_shape:
            output = output.reshape(input_shape)
        return output


if __name__ == "__main__":
    key = jax.random.PRNGKey(0)
    x = jax.random.normal(key, (2, 4, 16, 16), dtype=jnp.float32)  # NCHW

    aug = BasicAugmentationBasePallas(p=0.5, p_batch=1.0,
                                      same_on_batch=False, keepdim=False)

    # small f32 input: batch-spanning (VMEM-gate) path
    out = jax.block_until_ready(aug.forward(x, seed=0))
    bp = jax.block_until_ready(aug._params["batch_prob"])
    assert out.shape == x.shape and out.dtype == x.dtype
    assert bp.shape == (x.shape[0],)
    assert bool(jnp.all((bp == 0.0) | (bp == 1.0)))
    assert bool(jnp.allclose(out, x))                  # identity placeholder transform

    # uint8 input: standardization cast fused into the kernel (u8 -> f32)
    xu8 = (jax.random.uniform(jax.random.PRNGKey(1), (2, 4, 16, 16)) * 255).astype(jnp.uint8)
    out_u8 = jax.block_until_ready(aug.forward(xu8, seed=1))
    assert out_u8.dtype == jnp.float32
    assert bool(jnp.allclose(out_u8, xu8.astype(jnp.float32)))

    # larger per-sample rows: per-batch (SMEM-gated, pl.when) path
    xl = jax.random.normal(jax.random.PRNGKey(2), (2, 4, 128, 128), dtype=jnp.float32)
    out_l = jax.block_until_ready(aug.forward(xl, seed=2))
    assert out_l.shape == xl.shape and bool(jnp.allclose(out_l, xl))

    # feature dim not a multiple of 128: padded lane-dense path
    xr = jax.random.normal(jax.random.PRNGKey(3), (2, 3, 10, 10), dtype=jnp.float32)
    out_r = jax.block_until_ready(aug.forward(xr, seed=3))
    assert out_r.shape == xr.shape and bool(jnp.allclose(out_r, xr))

    print("KERNEL_OK")
</pallas_src>

<mosaic_0001>
module attributes {stable_mosaic.version = 11 : i64} {
  func.func @_gated_kernel_vmem(%arg0: i32, %arg1: memref<2x1xi32, #tpu.memory_space<vmem>>, %arg2: memref<2x1024xf32, #tpu.memory_space<vmem>>, %arg3: memref<2x1024xf32, #tpu.memory_space<vmem>>) attributes {dimension_semantics = [#tpu.dimension_semantics<parallel>], iteration_bounds = array<i64: 1>, scalar_prefetch = 0 : i64, scratch_operands = 0 : i64, tpu.core_type = #tpu.core_type<tc>, window_params = [{transform_indices = @transform_0, window_bounds = array<i64: 2, 1>}, {transform_indices = @transform_1, window_bounds = array<i64: 2, 1024>}, {transform_indices = @transform_2, window_bounds = array<i64: 2, 1024>}]} {
    %c0 = arith.constant 0 : index
    %c0_0 = arith.constant 0 : index
    %0 = vector.load %arg2[%c0, %c0_0] : memref<2x1024xf32, #tpu.memory_space<vmem>>, vector<2x1024xf32>
    %c0_1 = arith.constant 0 : index
    %c0_2 = arith.constant 0 : index
    %1 = vector.load %arg1[%c0_1, %c0_2] : memref<2x1xi32, #tpu.memory_space<vmem>>, vector<2x1xi32>
    %c0_i32 = arith.constant 0 : i32
    %2 = vector.broadcast %c0_i32 : i32 to vector<2x1xi32>
    %3 = arith.cmpi ne, %1, %2 : vector<2x1xi32>
    %4 = vector.shape_cast %3 : vector<2x1xi1> to vector<2x1xi1>
    %5 = vector.broadcast %4 : vector<2x1xi1> to vector<2x1024xi1>
    %6 = arith.select %5, %0, %0 : vector<2x1024xi1>, vector<2x1024xf32>
    %c0_3 = arith.constant 0 : index
    %c0_4 = arith.constant 0 : index
    %7 = vector.load %arg3[%c0_3, %c0_4] : memref<2x1024xf32, #tpu.memory_space<vmem>>, vector<2x1024xf32>
    tpu.vector_store %arg3[%c0_3, %c0_4], %6 {strides = array<i32>} : memref<2x1024xf32, #tpu.memory_space<vmem>>, vector<2x1024xf32>,
    return
  }
  func.func @transform_0(%arg0: i32) -> (i32, i32) {
    %c0_i32 = arith.constant 0 : i32
    %c0_i32_0 = arith.constant 0 : i32
    return %arg0, %c0_i32 : i32, i32
  }
  func.func @transform_1(%arg0: i32) -> (i32, i32) {
    %c0_i32 = arith.constant 0 : i32
    %c0_i32_0 = arith.constant 0 : i32
    return %arg0, %c0_i32 : i32, i32
  }
  func.func @transform_2(%arg0: i32) -> (i32, i32) {
    %c0_i32 = arith.constant 0 : i32
    %c0_i32_0 = arith.constant 0 : i32
    return %arg0, %c0_i32 : i32, i32
  }
}

</mosaic_0001>

<llo_original>
// kernel: tpu_custom_call.1
$region0: #{tpu_custom_call.1}
  #allocation0 [shape = 'u32[]', space=smem, size = 0x4, offset = 0x4, fixed_abs, tag = 'smem constant byte address 0x4 - core index']
  #allocation1 [shape = 'u32[144,128]{1,0:T(1,128)}', space=vmem, size = 0x12000, scoped, tag = 'internal scratch']
  %s0 = inlined_call_operand.vmem [shape: s32[2,1], index: 0, kind: input, shape index: {}]
  %s1 = inlined_call_operand.hbm [shape: f32[2,1024], index: 1, kind: input, shape index: {}]
  %s2 = inlined_call_operand.hbm [shape: f32[2,1024], index: 2, kind: output, shape index: {}]
  %s3 = sld [smem:[#allocation0]]
  $region22: #{tpu_custom_call.1} parent=0
    _
  %s5 = ssub.s32 1, %s3
  %s6 = scalar_select 0, %s5, %s3
  $region1: #{tpu_custom_call.1} parent=0
    #allocation2 [shape = 'u8[8192]{0}', space=vmem, size = 0x2000, scoped, tag = 'input window, operand 1, single buffered']
    #allocation3 [shape = 's32[1]{0}', space=sflag, size = 0x4, scoped, tag = 'scoped memory for tpu_custom_call.1']
    #allocation4 [shape = 's32[1]{0}', space=sflag, size = 0x4, scoped, tag = 'scoped memory for tpu_custom_call.1']
    #allocation5 [shape = 'u8[8192]{0}', space=vmem, size = 0x2000, scoped, tag = 'output window, operand 0, single buffered']
    %7 = vsyncpa [#allocation3], 0
    %8 = vsyncpa [#allocation4], 0
    // Predicated region
    $region2: #{tpu_custom_call.1} parent=1 // pred_check
      _
    $region3: #{tpu_custom_call.1} parent=1 // pred_check_branch
      %10 = sbr.rel (0) target = $region5
    $region4: #{tpu_custom_call.1} parent=1 // pred_region
      _
    $region5: #{tpu_custom_call.1} parent=1 // pred_fallthru
      _
    // Predicated region
    $region6: #{tpu_custom_call.1} parent=1 // pred_check
      _
    $region7: #{tpu_custom_call.1} parent=1 // pred_check_branch
      %12 = sbr.rel (0) target = $region9
    $region8: #{tpu_custom_call.1} parent=1 // pred_region
      %s14 = ssub.s32 256, 256
      %15 = vsyncadd [#allocation3], %s14
      %s17 = sshll.u32 [#allocation2], 4
      %s18 = int_to_ptr.vmem [resolvable:$true] %s17
      %20 = dma.hbm_to_vmem [thread:$0]  %s1, 256, %s18, [#allocation3]
    $region9: #{tpu_custom_call.1} parent=1 // pred_fallthru
      _
    // Predicated region
    $region10: #{tpu_custom_call.1} parent=1 // pred_check
      _
    $region11: #{tpu_custom_call.1} parent=1 // pred_check_branch
      %22 = sbr.rel (0) target = $region13
    $region12: #{tpu_custom_call.1} parent=1 // pred_region
      %23 = dma.done [#allocation3], 256
    $region13: #{tpu_custom_call.1} parent=1 // pred_fallthru
      _
    %v24 = vld [vmem:[#allocation2] sm:$0xff]
    %v25 = vld [vmem:[#allocation2 + $0x8] sm:$0xff]
    %26 = vst [vmem:[#allocation5] sm:$0xff] %v24
    %27 = vst [vmem:[#allocation5 + $0x8] sm:$0xff] %v25
    // Predicated region
    $region14: #{tpu_custom_call.1} parent=1 // pred_check
      _
    $region15: #{tpu_custom_call.1} parent=1 // pred_check_branch
      %29 = sbr.rel (0) target = $region17
    $region16: #{tpu_custom_call.1} parent=1 // pred_region
      %s31 = ssub.s32 256, 256
      %32 = vsyncadd [#allocation4], %s31
      %s34 = sshll.u32 [#allocation5], 4
      %s35 = int_to_ptr.vmem [resolvable:$true] %s34
      %37 = dma.vmem_to_hbm [thread:$0]  %s35, 256, %s2, [#allocation4]
    $region17: #{tpu_custom_call.1} parent=1 // pred_fallthru
      _
    // Predicated region
    $region18: #{tpu_custom_call.1} parent=1 // pred_check
      _
    $region19: #{tpu_custom_call.1} parent=1 // pred_check_branch
      %39 = sbr.rel (0) target = $region21
    $region20: #{tpu_custom_call.1} parent=1 // pred_region
      %40 = dma.done [#allocation4], 256
    $region21: #{tpu_custom_call.1} parent=1 // pred_fallthru
      _
    %41 = vsyncpa [#allocation3], 1
    %42 = vsyncpa [#allocation4], 1

</llo_original>
